<compile_context>
chip_gen: v7x
topology: tpu7x:2x2x1
jax: 0.10.0
libtpu: 0.0.40
codegen_flags: <defaults>
</compile_context>

<pallas_src>
import functools

import jax
import jax.numpy as jnp
from jax.experimental import pallas as pl
from jax.experimental.pallas import tpu as pltpu


def _fused_mha_kernel(x_ref, wkt_ref, wpt_ref, bp_ref, o_ref, *, num_heads, scale):
    """One batch element: causal MHA (q=k=v=x@Wk^T per head) + output projection."""
    x = x_ref[0]                                   # (T, C)
    T, C = x.shape
    hs = C // num_heads

    # All-heads key projection as a single wide MXU matmul: (T, C) @ (C, H*hs).
    k_all = jnp.dot(x, wkt_ref[...], preferred_element_type=jnp.float32)  # (T, C)

    # Causal mask (built once, reused across heads).
    row = jax.lax.broadcasted_iota(jnp.int32, (T, T), 0)
    col = jax.lax.broadcasted_iota(jnp.int32, (T, T), 1)
    causal = col <= row

    head_outs = []
    for h in range(num_heads):                     # static unroll over heads
        kh = k_all[:, h * hs:(h + 1) * hs]         # (T, hs); q = v = k per the module
        q = kh * scale                             # scale (T, hs), not (T, T)
        # s = q @ kh^T, contracting last dim against last dim (MXU trans_b; no k.T)
        s = jax.lax.dot_general(
            q, kh,
            dimension_numbers=(((1,), (1,)), ((), ())),
            preferred_element_type=jnp.float32)    # (T, T)
        s = jnp.where(causal, s, -jnp.inf)         # diagonal guarantees a finite max

        m = jnp.max(s, axis=-1, keepdims=True)
        p = jnp.exp(s - m)
        denom = jnp.sum(p, axis=-1, keepdims=True)
        # TODO(synk): attention-weight dropout omitted (eval-mode identity)

        # Deferred normalization: divide the small (T, hs) result, not (T, T).
        outh = jnp.dot(p, kh, preferred_element_type=jnp.float32)   # (T, hs)
        head_outs.append(outh * pl.reciprocal(denom, approx=True))

    cat = jnp.concatenate(head_outs, axis=-1)      # (T, C), lane-dense

    # Output projection (pre-transposed weight) + bias; single (T,C)@(C,C) matmul.
    y = jnp.dot(cat, wpt_ref[...], preferred_element_type=jnp.float32) + bp_ref[...]
    # TODO(synk): output dropout omitted (eval-mode identity)
    o_ref[0] = y.astype(o_ref.dtype)


def multi_head_attention(x, wk, wp, bp):
    """x: (B, T, C); wk: (H, hs, C); wp: (C, C); bp: (C,). Returns (B, T, C)."""
    B, T, C = x.shape
    H, hs, _ = wk.shape
    assert H * hs == C
    scale = float(C) ** -0.5

    # One-time layout plumbing outside the kernel (no in-kernel transposes):
    #   wkt[:, h*hs:(h+1)*hs] == wk[h].T  -> k_all = x @ wkt gives per-head columns
    wkt = jnp.transpose(wk, (2, 0, 1)).reshape(C, H * hs)   # (C, C)
    wpt = wp.T                                              # (C, C)
    bp2 = bp.reshape(1, C)

    flops = 2 * B * (T * C * C                 # all-heads key projection
                     + 2 * H * T * T * hs      # q@k^T and p@v per head
                     + T * C * C)              # output projection
    bytes_accessed = 4 * (x.size + wkt.size + wpt.size + bp2.size + B * T * C)

    kernel = functools.partial(_fused_mha_kernel, num_heads=H, scale=scale)

    # TODO(synk): for T >~ 1024 (esp. v7x with 64 MiB VMEM) switch to a
    # flash-style (tq, tk) tiling of the (T, T) scores; not needed at T<=512.
    return pl.pallas_call(
        kernel,
        out_shape=jax.ShapeDtypeStruct((B, T, C), x.dtype),
        grid_spec=pltpu.PrefetchScalarGridSpec(
            num_scalar_prefetch=0,
            grid=(B,),
            in_specs=[
                pl.BlockSpec((1, T, C), lambda b: (b, 0, 0)),
                pl.BlockSpec((C, C), lambda b: (0, 0)),
                pl.BlockSpec((C, C), lambda b: (0, 0)),
                pl.BlockSpec((1, C), lambda b: (0, 0)),
            ],
            out_specs=pl.BlockSpec((1, T, C), lambda b: (b, 0, 0)),
        ),
        compiler_params=pltpu.CompilerParams(
            dimension_semantics=("parallel",)),
        cost_estimate=pl.CostEstimate(
            flops=flops,
            transcendentals=B * H * T * T,
            bytes_accessed=bytes_accessed),
    )(x, wkt, wpt, bp2)


def _reference(x, wk, wp, bp):
    """Pure-JAX reference matching the PyTorch forward (eval mode)."""
    B, T, C = x.shape
    H, hs, _ = wk.shape
    outs = []
    for h in range(H):
        k = x @ wk[h].T                       # (B, T, hs); q = v = k per the module
        s = (k @ jnp.swapaxes(k, -2, -1)) * (C ** -0.5)
        mask = jnp.tril(jnp.ones((T, T), dtype=bool))
        s = jnp.where(mask, s, -jnp.inf)
        p = jax.nn.softmax(s, axis=-1)
        outs.append(p @ k)
    cat = jnp.concatenate(outs, axis=-1)      # (B, T, C)
    return cat @ wp.T + bp


if __name__ == "__main__":
    # Small shapes consistent with the module: dim_embedding = num_heads * head_size
    B, T, C, H = 2, 16, 128, 4
    hs = C // H

    key = jax.random.PRNGKey(0)
    kx, kk, kp, kb = jax.random.split(key, 4)
    x = jax.random.normal(kx, (B, T, C), dtype=jnp.float32)
    wk = jax.random.normal(kk, (H, hs, C), dtype=jnp.float32) * 0.05   # per-head key weight
    wp = jax.random.normal(kp, (C, C), dtype=jnp.float32) * 0.05       # projection weight (out, in)
    bp = jax.random.normal(kb, (C,), dtype=jnp.float32) * 0.05         # projection bias

    out = multi_head_attention(x, wk, wp, bp)
    out = jax.block_until_ready(out)

    ref = _reference(x, wk, wp, bp)
    assert out.shape == (B, T, C)
    assert jnp.allclose(out, ref, rtol=2e-2, atol=2e-2)

    print("KERNEL_OK")
</pallas_src>

<mosaic_0001>
module attributes {stable_mosaic.version = 11 : i64} {
  func.func @_fused_mha_kernel(%arg0: i32, %arg1: memref<1x16x128xf32, #tpu.memory_space<vmem>>, %arg2: memref<128x128xf32, #tpu.memory_space<vmem>>, %arg3: memref<128x128xf32, #tpu.memory_space<vmem>>, %arg4: memref<1x128xf32, #tpu.memory_space<vmem>>, %arg5: memref<1x16x128xf32, #tpu.memory_space<vmem>>) attributes {dimension_semantics = [#tpu.dimension_semantics<parallel>], iteration_bounds = array<i64: 2>, scalar_prefetch = 0 : i64, scratch_operands = 0 : i64, tpu.core_type = #tpu.core_type<tc>, window_params = [{transform_indices = @transform_0, window_bounds = array<i64: 1, 16, 128>}, {pipeline_mode = #tpu.pipeline_mode<synchronous>, transform_indices = @transform_1, window_bounds = array<i64: 128, 128>}, {pipeline_mode = #tpu.pipeline_mode<synchronous>, transform_indices = @transform_2, window_bounds = array<i64: 128, 128>}, {pipeline_mode = #tpu.pipeline_mode<synchronous>, transform_indices = @transform_3, window_bounds = array<i64: 1, 128>}, {transform_indices = @transform_4, window_bounds = array<i64: 1, 16, 128>}]} {
    %c0 = arith.constant 0 : index
    %c0_0 = arith.constant 0 : index
    %c0_1 = arith.constant 0 : index
    %0 = vector.load %arg1[%c0, %c0_0, %c0_1] : memref<1x16x128xf32, #tpu.memory_space<vmem>>, vector<1x16x128xf32>
    %1 = vector.shape_cast %0 : vector<1x16x128xf32> to vector<16x128xf32>
    %c0_2 = arith.constant 0 : index
    %c0_3 = arith.constant 0 : index
    %2 = vector.load %arg2[%c0_2, %c0_3] : memref<128x128xf32, #tpu.memory_space<vmem>>, vector<128x128xf32>
    %cst = arith.constant dense<0.000000e+00> : vector<16x128xf32>
    %3 = tpu.matmul %1, %2, %cst {dimension_numbers = #tpu.dot_dimension_numbers<[1], [0], [0], [1], [0, 0, 1, 1], [], []>} : vector<16x128xf32>, vector<128x128xf32>, vector<16x128xf32> -> vector<16x128xf32>
    %4 = tpu.iota {dimensions = array<i32: 0>} : vector<16x16xi32>
    %5 = tpu.iota {dimensions = array<i32: 1>} : vector<16x16xi32>
    %6 = arith.cmpi sle, %5, %4 : vector<16x16xi32>
    %7 = vector.extract_strided_slice %3 {offsets = [0, 0], sizes = [16, 32], strides = [1, 1]} : vector<16x128xf32> to vector<16x32xf32>
    %cst_4 = arith.constant 0.0883883461 : f32
    %8 = vector.broadcast %cst_4 : f32 to vector<16x32xf32>
    %9 = arith.mulf %7, %8 : vector<16x32xf32>
    %cst_5 = arith.constant dense<0.000000e+00> : vector<16x16xf32>
    %10 = tpu.matmul %9, %7, %cst_5 {dimension_numbers = #tpu.dot_dimension_numbers<[1], [1], [0], [0], [0, 0, 1, 0], [], []>} : vector<16x32xf32>, vector<16x32xf32>, vector<16x16xf32> -> vector<16x16xf32>
    %cst_6 = arith.constant 0xFF800000 : f32
    %11 = vector.broadcast %cst_6 : f32 to vector<16x16xf32>
    %12 = arith.select %6, %10, %11 : vector<16x16xi1>, vector<16x16xf32>
    %cst_7 = arith.constant dense<0xFF800000> : vector<16xf32>
    %13 = vector.multi_reduction <maximumf>, %12, %cst_7 [1] : vector<16x16xf32> to vector<16xf32>
    %14 = vector.shape_cast %13 : vector<16xf32> to vector<16x1xf32>
    %15 = vector.broadcast %14 : vector<16x1xf32> to vector<16x16xf32>
    %16 = arith.subf %12, %15 : vector<16x16xf32>
    %17 = math.exp %16 : vector<16x16xf32>
    %cst_8 = arith.constant dense<0.000000e+00> : vector<16xf32>
    %18 = vector.multi_reduction <add>, %17, %cst_8 [1] : vector<16x16xf32> to vector<16xf32>
    %19 = vector.shape_cast %18 : vector<16xf32> to vector<16x1xf32>
    %cst_9 = arith.constant dense<0.000000e+00> : vector<16x32xf32>
    %20 = tpu.matmul %17, %7, %cst_9 {dimension_numbers = #tpu.dot_dimension_numbers<[1], [0], [0], [1], [0, 0, 1, 1], [], []>} : vector<16x16xf32>, vector<16x32xf32>, vector<16x32xf32> -> vector<16x32xf32>
    %21 = tpu.reciprocal %19 {approx = true} : vector<16x1xf32> -> vector<16x1xf32>
    %22 = vector.broadcast %21 : vector<16x1xf32> to vector<16x32xf32>
    %23 = arith.mulf %20, %22 : vector<16x32xf32>
    %24 = vector.extract_strided_slice %3 {offsets = [0, 32], sizes = [16, 32], strides = [1, 1]} : vector<16x128xf32> to vector<16x32xf32>
    %cst_10 = arith.constant 0.0883883461 : f32
    %25 = vector.broadcast %cst_10 : f32 to vector<16x32xf32>
    %26 = arith.mulf %24, %25 : vector<16x32xf32>
    %cst_11 = arith.constant dense<0.000000e+00> : vector<16x16xf32>
    %27 = tpu.matmul %26, %24, %cst_11 {dimension_numbers = #tpu.dot_dimension_numbers<[1], [1], [0], [0], [0, 0, 1, 0], [], []>} : vector<16x32xf32>, vector<16x32xf32>, vector<16x16xf32> -> vector<16x16xf32>
    %cst_12 = arith.constant 0xFF800000 : f32
    %28 = vector.broadcast %cst_12 : f32 to vector<16x16xf32>
    %29 = arith.select %6, %27, %28 : vector<16x16xi1>, vector<16x16xf32>
    %cst_13 = arith.constant dense<0xFF800000> : vector<16xf32>
    %30 = vector.multi_reduction <maximumf>, %29, %cst_13 [1] : vector<16x16xf32> to vector<16xf32>
    %31 = vector.shape_cast %30 : vector<16xf32> to vector<16x1xf32>
    %32 = vector.broadcast %31 : vector<16x1xf32> to vector<16x16xf32>
    %33 = arith.subf %29, %32 : vector<16x16xf32>
    %34 = math.exp %33 : vector<16x16xf32>
    %cst_14 = arith.constant dense<0.000000e+00> : vector<16xf32>
    %35 = vector.multi_reduction <add>, %34, %cst_14 [1] : vector<16x16xf32> to vector<16xf32>
    %36 = vector.shape_cast %35 : vector<16xf32> to vector<16x1xf32>
    %cst_15 = arith.constant dense<0.000000e+00> : vector<16x32xf32>
    %37 = tpu.matmul %34, %24, %cst_15 {dimension_numbers = #tpu.dot_dimension_numbers<[1], [0], [0], [1], [0, 0, 1, 1], [], []>} : vector<16x16xf32>, vector<16x32xf32>, vector<16x32xf32> -> vector<16x32xf32>
    %38 = tpu.reciprocal %36 {approx = true} : vector<16x1xf32> -> vector<16x1xf32>
    %39 = vector.broadcast %38 : vector<16x1xf32> to vector<16x32xf32>
    %40 = arith.mulf %37, %39 : vector<16x32xf32>
    %41 = vector.extract_strided_slice %3 {offsets = [0, 64], sizes = [16, 32], strides = [1, 1]} : vector<16x128xf32> to vector<16x32xf32>
    %cst_16 = arith.constant 0.0883883461 : f32
    %42 = vector.broadcast %cst_16 : f32 to vector<16x32xf32>
    %43 = arith.mulf %41, %42 : vector<16x32xf32>
    %cst_17 = arith.constant dense<0.000000e+00> : vector<16x16xf32>
    %44 = tpu.matmul %43, %41, %cst_17 {dimension_numbers = #tpu.dot_dimension_numbers<[1], [1], [0], [0], [0, 0, 1, 0], [], []>} : vector<16x32xf32>, vector<16x32xf32>, vector<16x16xf32> -> vector<16x16xf32>
    %cst_18 = arith.constant 0xFF800000 : f32
    %45 = vector.broadcast %cst_18 : f32 to vector<16x16xf32>
    %46 = arith.select %6, %44, %45 : vector<16x16xi1>, vector<16x16xf32>
    %cst_19 = arith.constant dense<0xFF800000> : vector<16xf32>
    %47 = vector.multi_reduction <maximumf>, %46, %cst_19 [1] : vector<16x16xf32> to vector<16xf32>
    %48 = vector.shape_cast %47 : vector<16xf32> to vector<16x1xf32>
    %49 = vector.broadcast %48 : vector<16x1xf32> to vector<16x16xf32>
    %50 = arith.subf %46, %49 : vector<16x16xf32>
    %51 = math.exp %50 : vector<16x16xf32>
    %cst_20 = arith.constant dense<0.000000e+00> : vector<16xf32>
    %52 = vector.multi_reduction <add>, %51, %cst_20 [1] : vector<16x16xf32> to vector<16xf32>
    %53 = vector.shape_cast %52 : vector<16xf32> to vector<16x1xf32>
    %cst_21 = arith.constant dense<0.000000e+00> : vector<16x32xf32>
    %54 = tpu.matmul %51, %41, %cst_21 {dimension_numbers = #tpu.dot_dimension_numbers<[1], [0], [0], [1], [0, 0, 1, 1], [], []>} : vector<16x16xf32>, vector<16x32xf32>, vector<16x32xf32> -> vector<16x32xf32>
    %55 = tpu.reciprocal %53 {approx = true} : vector<16x1xf32> -> vector<16x1xf32>
    %56 = vector.broadcast %55 : vector<16x1xf32> to vector<16x32xf32>
    %57 = arith.mulf %54, %56 : vector<16x32xf32>
    %58 = vector.extract_strided_slice %3 {offsets = [0, 96], sizes = [16, 32], strides = [1, 1]} : vector<16x128xf32> to vector<16x32xf32>
    %cst_22 = arith.constant 0.0883883461 : f32
    %59 = vector.broadcast %cst_22 : f32 to vector<16x32xf32>
    %60 = arith.mulf %58, %59 : vector<16x32xf32>
    %cst_23 = arith.constant dense<0.000000e+00> : vector<16x16xf32>
    %61 = tpu.matmul %60, %58, %cst_23 {dimension_numbers = #tpu.dot_dimension_numbers<[1], [1], [0], [0], [0, 0, 1, 0], [], []>} : vector<16x32xf32>, vector<16x32xf32>, vector<16x16xf32> -> vector<16x16xf32>
    %cst_24 = arith.constant 0xFF800000 : f32
    %62 = vector.broadcast %cst_24 : f32 to vector<16x16xf32>
    %63 = arith.select %6, %61, %62 : vector<16x16xi1>, vector<16x16xf32>
    %cst_25 = arith.constant dense<0xFF800000> : vector<16xf32>
    %64 = vector.multi_reduction <maximumf>, %63, %cst_25 [1] : vector<16x16xf32> to vector<16xf32>
    %65 = vector.shape_cast %64 : vector<16xf32> to vector<16x1xf32>
    %66 = vector.broadcast %65 : vector<16x1xf32> to vector<16x16xf32>
    %67 = arith.subf %63, %66 : vector<16x16xf32>
    %68 = math.exp %67 : vector<16x16xf32>
    %cst_26 = arith.constant dense<0.000000e+00> : vector<16xf32>
    %69 = vector.multi_reduction <add>, %68, %cst_26 [1] : vector<16x16xf32> to vector<16xf32>
    %70 = vector.shape_cast %69 : vector<16xf32> to vector<16x1xf32>
    %cst_27 = arith.constant dense<0.000000e+00> : vector<16x32xf32>
    %71 = tpu.matmul %68, %58, %cst_27 {dimension_numbers = #tpu.dot_dimension_numbers<[1], [0], [0], [1], [0, 0, 1, 1], [], []>} : vector<16x16xf32>, vector<16x32xf32>, vector<16x32xf32> -> vector<16x32xf32>
    %72 = tpu.reciprocal %70 {approx = true} : vector<16x1xf32> -> vector<16x1xf32>
    %73 = vector.broadcast %72 : vector<16x1xf32> to vector<16x32xf32>
    %74 = arith.mulf %71, %73 : vector<16x32xf32>
    %75 = tpu.concatenate %23, %40, %57, %74 in 1 : vector<16x32xf32>, vector<16x32xf32>, vector<16x32xf32>, vector<16x32xf32> -> vector<16x128xf32>
    %c0_28 = arith.constant 0 : index
    %c0_29 = arith.constant 0 : index
    %76 = vector.load %arg3[%c0_28, %c0_29] : memref<128x128xf32, #tpu.memory_space<vmem>>, vector<128x128xf32>
    %cst_30 = arith.constant dense<0.000000e+00> : vector<16x128xf32>
    %77 = tpu.matmul %75, %76, %cst_30 {dimension_numbers = #tpu.dot_dimension_numbers<[1], [0], [0], [1], [0, 0, 1, 1], [], []>} : vector<16x128xf32>, vector<128x128xf32>, vector<16x128xf32> -> vector<16x128xf32>
    %c0_31 = arith.constant 0 : index
    %c0_32 = arith.constant 0 : index
    %78 = vector.load %arg4[%c0_31, %c0_32] : memref<1x128xf32, #tpu.memory_space<vmem>>, vector<1x128xf32>
    %79 = vector.broadcast %78 : vector<1x128xf32> to vector<16x128xf32>
    %80 = arith.addf %77, %79 : vector<16x128xf32>
    %c0_33 = arith.constant 0 : index
    %c0_34 = arith.constant 0 : index
    %c0_35 = arith.constant 0 : index
    %81 = vector.load %arg5[%c0_33, %c0_34, %c0_35] : memref<1x16x128xf32, #tpu.memory_space<vmem>>, vector<1x16x128xf32>
    %82 = vector.shape_cast %81 : vector<1x16x128xf32> to vector<16x128xf32>
    %83 = vector.shape_cast %80 : vector<16x128xf32> to vector<1x16x128xf32>
    tpu.vector_store %arg5[%c0_33, %c0_34, %c0_35], %83 {strides = array<i32>} : memref<1x16x128xf32, #tpu.memory_space<vmem>>, vector<1x16x128xf32>,
    return
  }
  func.func @transform_0(%arg0: i32) -> (i32, i32, i32) {
    %c0_i32 = arith.constant 0 : i32
    %c0_i32_0 = arith.constant 0 : i32
    %c0_i32_1 = arith.constant 0 : i32
    return %arg0, %c0_i32, %c0_i32_0 : i32, i32, i32
  }
  func.func @transform_1(%arg0: i32) -> (i32, i32) {
    %c0_i32 = arith.constant 0 : i32
    %c0_i32_0 = arith.constant 0 : i32
    %c0_i32_1 = arith.constant 0 : i32
    return %c0_i32, %c0_i32_0 : i32, i32
  }
  func.func @transform_2(%arg0: i32) -> (i32, i32) {
    %c0_i32 = arith.constant 0 : i32
    %c0_i32_0 = arith.constant 0 : i32
    %c0_i32_1 = arith.constant 0 : i32
    return %c0_i32, %c0_i32_0 : i32, i32
  }
  func.func @transform_3(%arg0: i32) -> (i32, i32) {
    %c0_i32 = arith.constant 0 : i32
    %c0_i32_0 = arith.constant 0 : i32
    %c0_i32_1 = arith.constant 0 : i32
    return %c0_i32, %c0_i32_0 : i32, i32
  }
  func.func @transform_4(%arg0: i32) -> (i32, i32, i32) {
    %c0_i32 = arith.constant 0 : i32
    %c0_i32_0 = arith.constant 0 : i32
    %c0_i32_1 = arith.constant 0 : i32
    return %arg0, %c0_i32, %c0_i32_0 : i32, i32, i32
  }
}

</mosaic_0001>

<llo_original>
// kernel: tpu_custom_call.1
$region0: #{tpu_custom_call.1}
  #allocation0 [shape = 'u32[]', space=smem, size = 0x4, offset = 0x4, fixed_abs, tag = 'smem constant byte address 0x4 - core index']
  #allocation1 [shape = 'u32[144,128]{1,0:T(1,128)}', space=vmem, size = 0x12000, scoped, tag = 'internal scratch']
  %s0 = inlined_call_operand.hbm [shape: f32[2,16,128], index: 0, kind: input, shape index: {}]
  %s1 = inlined_call_operand.hbm [shape: f32[128,128], index: 1, kind: input, shape index: {}]
  %s2 = inlined_call_operand.hbm [shape: f32[128,128], index: 2, kind: input, shape index: {}]
  %s3 = inlined_call_operand.vmem [shape: f32[1,128], index: 3, kind: input, shape index: {}]
  %s4 = inlined_call_operand.hbm [shape: f32[2,16,128], index: 4, kind: output, shape index: {}]
  %s5 = sld [smem:[#allocation0]]
  $region61: #{tpu_custom_call.1} parent=0
    _
  %s7 = ssub.s32 1, %s5
  %s8 = scalar_select 0, %s7, %s5
  $region1: #{tpu_custom_call.1} parent=0
    #allocation2 [shape = 'u8[16384]{0}', space=vmem, size = 0x4000, scoped, tag = 'input window, operand 0']
    #allocation3 [shape = 's32[2]{0}', space=sflag, size = 0x8, scoped, tag = 'scoped memory for tpu_custom_call.1']
    #allocation4 [shape = 's32[2]{0}', space=sflag, size = 0x8, scoped, tag = 'scoped memory for tpu_custom_call.1']
    #allocation5 [shape = 'u8[65536]{0}', space=vmem, size = 0x10000, scoped, tag = 'input window, operand 1, single buffered']
    #allocation6 [shape = 's32[1]{0}', space=sflag, size = 0x4, scoped, tag = 'scoped memory for tpu_custom_call.1']
    #allocation7 [shape = 'u8[65536]{0}', space=vmem, size = 0x10000, scoped, tag = 'input window, operand 2, single buffered']
    #allocation8 [shape = 'u8[16384]{0}', space=vmem, size = 0x4000, scoped, tag = 'output window, operand 0']
    %9 = vsyncpa [#allocation3], 0
    %s10 = scalar_lea.sflag [#allocation3], 1
    %11 = vsyncpa %s10, 0
    %12 = vsyncpa [#allocation6], 0
    %13 = vsyncpa [#allocation4], 0
    %s14 = scalar_lea.sflag [#allocation4], 1
    %15 = vsyncpa %s14, 0
    loop: start=0, step=1, limit=4
    $region2: #{tpu_custom_call.1} parent=1 // loop_pre_header
      _
    $region3: #{tpu_custom_call.1} parent=1 // loop_header
      %s17 = sphi 0, %s21
      %p18 = scmp.ge.s32.totalorder %s17, 4
      %s27 = sphi 0, %s29
      %s30 = sphi 0, %s27
      %s31 = sphi 0, %s30
      %s47 = sphi 0, %s31
      %s51 = sphi 0, %s51
      %s53 = sphi 0, %s51
      %s54 = sphi 0, %s53
      %s68 = sphi 0, %s54
      %s72 = sphi 0, %s72
      %s74 = sphi 0, %s72
      %s75 = sphi 0, %s74
      %s89 = sphi 0, %s75
      %s93 = sphi 0, %s93
      %s95 = sphi 0, %s93
      %s96 = sphi 0, %s95
      %s110 = sphi 0, %s96
      %s116 = sphi 0, %s118
      %s119 = sphi 0, %s116
      %s120 = sphi 0, %s119
      %s136 = sphi 0, %s120
    $region4: #{tpu_custom_call.1} parent=1 // loop_header_branch
      %20 = sbr.rel (%p18) target = $region8
    $region5: #{tpu_custom_call.1} parent=1 // loop_body
      %s22 = ssub.s32 %s17, 1
      %s23 = ssub.s32 %s17, 2
      %s24 = sadd.s32 %s17, 1
      %s25 = ssub.s32 %s17, %s24
      %p26 = scmp.eq.s32.totalorder %s25, 0
      %s28 = sadd.s32 %s27, 1
      %s29 = scalar_select %p26, %s27, %s28
      %p32 = pneg %p26
      %p33 = scmp.eq.s32.totalorder %s17, 1
      %p34 = por %p32, %p33
      %p35 = scmp.ne.s32.totalorder %s27, %s30
      %p36 = scmp.eq.s32.totalorder %s17, 0
      %p37 = por %p35, %p36
      %p38 = scmp.ne.s32.totalorder %s27, %s30
      %p39 = scmp.eq.s32.totalorder %s22, 1
      %p40 = por %p38, %p39
      %p41 = scmp.ne.s32.totalorder %s30, %s31
      %p42 = scmp.eq.s32.totalorder %s22, 0
      %p43 = por %p41, %p42
      %p44 = scmp.ne.s32.totalorder %s30, %s31
      %p45 = scmp.eq.s32.totalorder %s23, 1
      %p46 = por %p44, %p45
      %p48 = scmp.ne.s32.totalorder %s31, %s47
      %p49 = scmp.eq.s32.totalorder %s23, 0
      %p50 = por %p48, %p49
      %s52 = sadd.s32 %s51, 1
      %p55 = scmp.eq.s32.totalorder %s17, 1
      %p56 = scmp.ne.s32.totalorder %s51, %s53
      %p57 = scmp.eq.s32.totalorder %s17, 0
      %p58 = por %p56, %p57
      %p59 = scmp.ne.s32.totalorder %s51, %s53
      %p60 = scmp.eq.s32.totalorder %s22, 1
      %p61 = por %p59, %p60
      %p62 = scmp.ne.s32.totalorder %s53, %s54
      %p63 = scmp.eq.s32.totalorder %s22, 0
      %p64 = por %p62, %p63
      %p65 = scmp.ne.s32.totalorder %s53, %s54
      %p66 = scmp.eq.s32.totalorder %s23, 1
      %p67 = por %p65, %p66
      %p69 = scmp.ne.s32.totalorder %s54, %s68
      %p70 = scmp.eq.s32.totalorder %s23, 0
      %p71 = por %p69, %p70
      %s73 = sadd.s32 %s72, 1
      %p76 = scmp.eq.s32.totalorder %s17, 1
      %p77 = scmp.ne.s32.totalorder %s72, %s74
      %p78 = scmp.eq.s32.totalorder %s17, 0
      %p79 = por %p77, %p78
      %p80 = scmp.ne.s32.totalorder %s72, %s74
      %p81 = scmp.eq.s32.totalorder %s22, 1
      %p82 = por %p80, %p81
      %p83 = scmp.ne.s32.totalorder %s74, %s75
      %p84 = scmp.eq.s32.totalorder %s22, 0
      %p85 = por %p83, %p84
      %p86 = scmp.ne.s32.totalorder %s74, %s75
      %p87 = scmp.eq.s32.totalorder %s23, 1
      %p88 = por %p86, %p87
      %p90 = scmp.ne.s32.totalorder %s75, %s89
      %p91 = scmp.eq.s32.totalorder %s23, 0
      %p92 = por %p90, %p91
      %s94 = sadd.s32 %s93, 1
      %p97 = scmp.eq.s32.totalorder %s17, 1
      %p98 = scmp.ne.s32.totalorder %s93, %s95
      %p99 = scmp.eq.s32.totalorder %s17, 0
      %p100 = por %p98, %p99
      %p101 = scmp.ne.s32.totalorder %s93, %s95
      %p102 = scmp.eq.s32.totalorder %s22, 1
      %p103 = por %p101, %p102
      %p104 = scmp.ne.s32.totalorder %s95, %s96
      %p105 = scmp.eq.s32.totalorder %s22, 0
      %p106 = por %p104, %p105
      %p107 = scmp.ne.s32.totalorder %s95, %s96
      %p108 = scmp.eq.s32.totalorder %s23, 1
      %p109 = por %p107, %p108
      %p111 = scmp.ne.s32.totalorder %s96, %s110
      %p112 = scmp.eq.s32.totalorder %s23, 0
      %p113 = por %p111, %p112
      %s114 = ssub.s32 %s17, %s24
      %p115 = scmp.eq.s32.totalorder %s114, 0
      %s117 = sadd.s32 %s116, 1
      %s118 = scalar_select %p115, %s116, %s117
      %p121 = pneg %p115
      %p122 = scmp.eq.s32.totalorder %s17, 1
      %p123 = por %p121, %p122
      %p124 = scmp.ne.s32.totalorder %s116, %s119
      %p125 = scmp.eq.s32.totalorder %s17, 0
      %p126 = por %p124, %p125
      %p127 = scmp.ne.s32.totalorder %s116, %s119
      %p128 = scmp.eq.s32.totalorder %s22, 1
      %p129 = por %p127, %p128
      %p130 = scmp.ne.s32.totalorder %s119, %s120
      %p131 = scmp.eq.s32.totalorder %s22, 0
      %p132 = por %p130, %p131
      %p133 = scmp.ne.s32.totalorder %s119, %s120
      %p134 = scmp.eq.s32.totalorder %s23, 1
      %p135 = por %p133, %p134
      %p137 = scmp.ne.s32.totalorder %s120, %s136
      %p138 = scmp.eq.s32.totalorder %s23, 0
      %p139 = por %p137, %p138
      %p140 = scmp.le.s32.totalorder 1, %s17
      %p141 = scmp.lt.s32.totalorder %s17, 3
      %p142 = pnand %p140, %p141
      %p143 = pneg %p142
      // Predicated region
      $region9: #{tpu_custom_call.1} parent=5 // pred_check
        _
      $region10: #{tpu_custom_call.1} parent=5 // pred_check_branch
        %145 = sbr.rel (%p142) target = $region12
      $region11: #{tpu_custom_call.1} parent=5 // pred_region
        %s146 = ssub.s32 %s17, 1
        // Predicated region
        $region13: #{tpu_custom_call.1} parent=11 // pred_check
          %p147 = pneg %p64
        $region14: #{tpu_custom_call.1} parent=11 // pred_check_branch
          %149 = sbr.rel (%p147) target = $region16
        $region15: #{tpu_custom_call.1} parent=11 // pred_region
          %s151 = ssub.s32 2048, 2048
          %152 = vsyncadd [#allocation6], %s151
          %s153 = sshll.u32 [#allocation5], 4
          %s154 = int_to_ptr.vmem [resolvable:$true] %s153
          %159 = dma.hbm_to_vmem [thread:$0]  %s1, 2048, %s154, [#allocation6], 128, 128, 8
        $region16: #{tpu_custom_call.1} parent=11 // pred_fallthru
          _
        // Predicated region
        $region17: #{tpu_custom_call.1} parent=11 // pred_check
          %p160 = pneg %p85
        $region18: #{tpu_custom_call.1} parent=11 // pred_check_branch
          %162 = sbr.rel (%p160) target = $region20
        $region19: #{tpu_custom_call.1} parent=11 // pred_region
          %s164 = ssub.s32 2048, 2048
          %165 = vsyncadd [#allocation6], %s164
          %s166 = sshll.u32 [#allocation7], 4
          %s167 = int_to_ptr.vmem [resolvable:$true] %s166
          %172 = dma.hbm_to_vmem [thread:$0]  %s2, 2048, %s167, [#allocation6], 128, 128, 8
        $region20: #{tpu_custom_call.1} parent=11 // pred_fallthru
          _
        // Predicated region
        $region21: #{tpu_custom_call.1} parent=11 // pred_check
          %p173 = pneg %p106
        $region22: #{tpu_custom_call.1} parent=11 // pred_check_branch
          %175 = sbr.rel (%p173) target = $region24
        $region23: #{tpu_custom_call.1} parent=11 // pred_region
          _
        $region24: #{tpu_custom_call.1} parent=11 // pred_fallthru
          _
      $region12: #{tpu_custom_call.1} parent=5 // pred_fallthru
        _
      %p176 = scmp.lt.s32.totalorder %s17, 2
      // Predicated region
      $region25: #{tpu_custom_call.1} parent=5 // pred_check
        %p177 = pneg %p176
      $region26: #{tpu_custom_call.1} parent=5 // pred_check_branch
        %179 = sbr.rel (%p177) target = $region28
      $region27: #{tpu_custom_call.1} parent=5 // pred_region
        // Predicated region
        $region29: #{tpu_custom_call.1} parent=27 // pred_check
          %p180 = pneg %p37
        $region30: #{tpu_custom_call.1} parent=27 // pred_check_branch
          %182 = sbr.rel (%p180) target = $region32
        $region31: #{tpu_custom_call.1} parent=27 // pred_region
          %s183 = sand.u32 %s27, 1
          %s184 = scalar_lea.sflag [#allocation3], %s183
          %s185 = sand.u32 %s27, 1
          %s186 = smul.addr %s185, 16
          %s187 = scalar_lea.vmem [#allocation2], %s186
          %s189 = ssub.s32 256, 256
          %190 = vsyncadd %s184, %s189
          %s191 = smul.addr %s17, 2
          %s192 = smul.addr %s191, 128
          %s193 = scalar_lea.hbm %s0, %s192
          %s194 = sshll.u32 %s187, 4
          %s195 = int_to_ptr.vmem [resolvable:$true] %s194
          %200 = dma.hbm_to_vmem [thread:$0]  %s193, 256, %s195, %s184, 128, 128, 8
        $region32: #{tpu_custom_call.1} parent=27 // pred_fallthru
          _
      $region28: #{tpu_custom_call.1} parent=5 // pred_fallthru
        _
      %p201 = scmp.le.s32.totalorder 1, %s17
      %p202 = scmp.lt.s32.totalorder %s17, 3
      %p203 = pnand %p201, %p202
      %p204 = pneg %p203
      // Predicated region
      $region33: #{tpu_custom_call.1} parent=5 // pred_check
        _
      $region34: #{tpu_custom_call.1} parent=5 // pred_check_branch
        %206 = sbr.rel (%p203) target = $region36
      $region35: #{tpu_custom_call.1} parent=5 // pred_region
        %s207 = ssub.s32 %s17, 1
        %s208 = sand.u32 %s30, 1
        %s209 = scalar_lea.sflag [#allocation3], %s208
        %s210 = sand.u32 %s30, 1
        %s211 = smul.addr %s210, 16
        %s212 = scalar_lea.vmem [#allocation2], %s211
        // Predicated region
        $region37: #{tpu_custom_call.1} parent=35 // pred_check
          %p213 = pneg %p43
        $region38: #{tpu_custom_call.1} parent=35 // pred_check_branch
          %215 = sbr.rel (%p213) target = $region40
        $region39: #{tpu_custom_call.1} parent=35 // pred_region
          %216 = dma.done %s209, 256
        $region40: #{tpu_custom_call.1} parent=35 // pred_fallthru
          _
        // Predicated region
        $region41: #{tpu_custom_call.1} parent=35 // pred_check
          %p217 = pneg %p64
        $region42: #{tpu_custom_call.1} parent=35 // pred_check_branch
          %219 = sbr.rel (%p217) target = $region44
        $region43: #{tpu_custom_call.1} parent=35 // pred_region
          %220 = dma.done [#allocation6], 2048
        $region44: #{tpu_custom_call.1} parent=35 // pred_fallthru
          _
        // Predicated region
        $region45: #{tpu_custom_call.1} parent=35 // pred_check
          %p221 = pneg %p85
        $region46: #{tpu_custom_call.1} parent=35 // pred_check_branch
          %223 = sbr.rel (%p221) target = $region48
        $region47: #{tpu_custom_call.1} parent=35 // pred_region
          %224 = dma.done [#allocation6], 2048
        $region48: #{tpu_custom_call.1} parent=35 // pred_fallthru
          _
        %s225 = sand.u32 %s30, 1
        %s226 = scalar_lea.sflag [#allocation3], %s225
        %s227 = sand.u32 %s30, 1
        %s228 = smul.addr %s227, 16
        %s229 = scalar_lea.vmem [#allocation2], %s228
        %p230 = pneg %p43
        %p231 = pneg %p40
        %p232 = pneg %p64
        %p233 = pneg %p61
        %p234 = pneg %p85
        %p235 = pneg %p82
        %p236 = pneg %p106
        %p237 = pneg %p103
        %p238 = pneg %p132
        %p239 = pneg %p129
        %s240 = sand.u32 %s119, 1
        %s241 = scalar_lea.sflag [#allocation4], %s240
        %s242 = sand.u32 %s119, 1
        %s243 = smul.addr %s242, 16
        %s244 = scalar_lea.vmem [#allocation8], %s243
        %v245 = vld [vmem:[%s212] sm:$0xff]
        %v246 = vld [vmem:[%s212 + $0x8] sm:$0xff]
        %v247 = vld [vmem:[#allocation5] sm:$0xff]
        %v248 = vld [vmem:[#allocation5 + $0x8] sm:$0xff]
        %v249 = vld [vmem:[#allocation5 + $0x10] sm:$0xff]
        %v250 = vld [vmem:[#allocation5 + $0x18] sm:$0xff]
        %v251 = vld [vmem:[#allocation5 + $0x20] sm:$0xff]
        %v252 = vld [vmem:[#allocation5 + $0x28] sm:$0xff]
        %v253 = vld [vmem:[#allocation5 + $0x30] sm:$0xff]
        %v254 = vld [vmem:[#allocation5 + $0x38] sm:$0xff]
        %v255 = vld [vmem:[#allocation5 + $0x40] sm:$0xff]
        %v256 = vld [vmem:[#allocation5 + $0x48] sm:$0xff]
        %v257 = vld [vmem:[#allocation5 + $0x50] sm:$0xff]
        %v258 = vld [vmem:[#allocation5 + $0x58] sm:$0xff]
        %v259 = vld [vmem:[#allocation5 + $0x60] sm:$0xff]
        %v260 = vld [vmem:[#allocation5 + $0x68] sm:$0xff]
        %v261 = vld [vmem:[#allocation5 + $0x70] sm:$0xff]
        %v262 = vld [vmem:[#allocation5 + $0x78] sm:$0xff]
        %263 = vmatprep.subr.mxu0 0.0
        %264 = vmatpush1.msra.mxu0 %v247
        %265 = vmatprep.subr.mxu0 0.0
        %266 = vmatpush1.msra.mxu0 %v248
        %267 = vmatprep.subr.mxu0 0.0
        %268 = vmatpush1.msra.mxu0 %v249
        %269 = vmatprep.subr.mxu0 0.0
        %270 = vmatpush1.msra.mxu0 %v250
        %271 = vmatprep.subr.mxu0 0.0
        %272 = vmatpush1.msra.mxu0 %v251
        %273 = vmatprep.subr.mxu0 0.0
        %274 = vmatpush1.msra.mxu0 %v252
        %275 = vmatprep.subr.mxu0 0.0
        %276 = vmatpush1.msra.mxu0 %v253
        %277 = vmatprep.subr.mxu0 0.0
        %278 = vmatpush1.msra.mxu0 %v254
        %279 = vmatprep.subr.mxu0 0.0
        %280 = vmatpush1.msra.mxu0 %v255
        %281 = vmatprep.subr.mxu0 0.0
        %282 = vmatpush1.msra.mxu0 %v256
        %283 = vmatprep.subr.mxu0 0.0
        %284 = vmatpush1.msra.mxu0 %v257
        %285 = vmatprep.subr.mxu0 0.0
        %286 = vmatpush1.msra.mxu0 %v258
        %287 = vmatprep.subr.mxu0 0.0
        %288 = vmatpush1.msra.mxu0 %v259
        %289 = vmatprep.subr.mxu0 0.0
        %290 = vmatpush1.msra.mxu0 %v260
        %291 = vmatprep.subr.mxu0 0.0
        %292 = vmatpush1.msra.mxu0 %v261
        %293 = vmatprep.subr.mxu0 0.0
        %294 = vmatpush1.msra.mxu0 %v262
        %295 = vmatprep.subr.mxu0 0.0
        %296 = vmatpush1.msra.mxu0 0.0
        %297 = vmatprep.subr.mxu0 0.0
        %298 = vmatpush1.msra.mxu0 0.0
        %299 = vmatprep.subr.mxu0 0.0
        %300 = vmatpush1.msra.mxu0 0.0
        %301 = vmatprep.subr.mxu0 0.0
        %302 = vmatpush1.msra.mxu0 0.0
        %303 = vmatprep.subr.mxu0 0.0
        %304 = vmatpush1.msra.mxu0 0.0
        %305 = vmatprep.subr.mxu0 0.0
        %306 = vmatpush1.msra.mxu0 0.0
        %307 = vmatprep.subr.mxu0 0.0
        %308 = vmatpush1.msra.mxu0 0.0
        %309 = vmatprep.subr.mxu0 0.0
        %310 = vmatpush1.msra.mxu0 0.0
        %311 = vmatprep.subr.mxu0 0.0
        %312 = vmatpush1.msra.mxu0 0.0
        %313 = vmatprep.subr.mxu0 0.0
        %314 = vmatpush1.msra.mxu0 0.0
        %315 = vmatprep.subr.mxu0 0.0
        %316 = vmatpush1.msra.mxu0 0.0
        %317 = vmatprep.subr.mxu0 0.0
        %318 = vmatpush1.msra.mxu0 0.0
        %319 = vmatprep.subr.mxu0 0.0
        %320 = vmatpush1.msra.mxu0 0.0
        %321 = vmatprep.subr.mxu0 0.0
        %322 = vmatpush1.msra.mxu0 0.0
        %323 = vmatprep.subr.mxu0 0.0
        %324 = vmatpush1.msra.mxu0 0.0
        %325 = vmatprep.subr.mxu0 0.0
        %326 = vmatpush1.msra.mxu0 0.0
        %327 = vmatprep.mubr.f32.mxu0 0.0
        %328 = vmatmul.mubr.f32.gmra.mrb[0].mxu0 %v245
        %v329 = vpop.f32.mrb[0].mxu0
        %v330 = vadd.f32 0.0, %v329
        %v331 = vpop.f32.mrb[0].mxu0
        %332 = vmatprep.mubr.f32.mxu0 0.0
        %333 = vmatmul.mubr.f32.gmra.mrb[0].mxu0 %v246
        %v334 = vpop.f32.mrb[0].mxu0
        %v335 = vadd.f32 0.0, %v334
        %v336 = vpop.f32.mrb[0].mxu0
        %337 = vdwg.mxu0
        %v338 = vlaneseq
        %v339 = vshrl.u32 %v338, 7
        %v340 = vadd.s32 %v339, 8
        %v341 = vlaneseq
        %v342 = vand.u32 %v341, 127
        %vm343 = vcmp.le.s32.totalorder %v342, %v339
        %vm344 = vcmp.le.s32.totalorder %v342, %v340
        %v345 = vmul.f32 %v330, 0.088388346
        %v346 = vmul.f32 %v335, 0.088388346
        %vm347 = vcmask 261120
        %v349 = vsel %vm347, %v345, 0
        %v352 = vsel %vm347, %v346, 0
        %v355 = vsel %vm347, %v330, 0
        %v358 = vsel %vm347, %v335, 0
        %360 = vmatprep.subr.mxu0 0.0
        %361 = vmatpush1.xpose.msra.mxu0 %v355
        %362 = vmatprep.subr.mxu0 0.0
        %363 = vmatpush1.xpose.msra.mxu0 %v358
        %364 = vmatprep.subr.mxu0 0.0
        %365 = vmatpush1.xpose.msra.mxu0 0.0
        %366 = vmatprep.subr.mxu0 0.0
        %367 = vmatpush1.xpose.msra.mxu0 0.0
        %368 = vmatprep.subr.mxu0 0.0
        %369 = vmatpush1.xpose.msra.mxu0 0.0
        %370 = vmatprep.subr.mxu0 0.0
        %371 = vmatpush1.xpose.msra.mxu0 0.0
        %372 = vmatprep.subr.mxu0 0.0
        %373 = vmatpush1.xpose.msra.mxu0 0.0
        %374 = vmatprep.subr.mxu0 0.0
        %375 = vmatpush1.xpose.msra.mxu0 0.0
        %376 = vmatprep.subr.mxu0 0.0
        %377 = vmatpush1.xpose.msra.mxu0 0.0
        %378 = vmatprep.subr.mxu0 0.0
        %379 = vmatpush1.xpose.msra.mxu0 0.0
        %380 = vmatprep.subr.mxu0 0.0
        %381 = vmatpush1.xpose.msra.mxu0 0.0
        %382 = vmatprep.subr.mxu0 0.0
        %383 = vmatpush1.xpose.msra.mxu0 0.0
        %384 = vmatprep.subr.mxu0 0.0
        %385 = vmatpush1.xpose.msra.mxu0 0.0
        %386 = vmatprep.subr.mxu0 0.0
        %387 = vmatpush1.xpose.msra.mxu0 0.0
        %388 = vmatprep.subr.mxu0 0.0
        %389 = vmatpush1.xpose.msra.mxu0 0.0
        %390 = vmatprep.subr.mxu0 0.0
        %391 = vmatpush1.xpose.msra.mxu0 0.0
        %392 = vmatprep.subr.mxu0 0.0
        %393 = vmatpush1.xpose.msra.mxu0 0.0
        %394 = vmatprep.subr.mxu0 0.0
        %395 = vmatpush1.xpose.msra.mxu0 0.0
        %396 = vmatprep.subr.mxu0 0.0
        %397 = vmatpush1.xpose.msra.mxu0 0.0
        %398 = vmatprep.subr.mxu0 0.0
        %399 = vmatpush1.xpose.msra.mxu0 0.0
        %400 = vmatprep.subr.mxu0 0.0
        %401 = vmatpush1.xpose.msra.mxu0 0.0
        %402 = vmatprep.subr.mxu0 0.0
        %403 = vmatpush1.xpose.msra.mxu0 0.0
        %404 = vmatprep.subr.mxu0 0.0
        %405 = vmatpush1.xpose.msra.mxu0 0.0
        %406 = vmatprep.subr.mxu0 0.0
        %407 = vmatpush1.xpose.msra.mxu0 0.0
        %408 = vmatprep.subr.mxu0 0.0
        %409 = vmatpush1.xpose.msra.mxu0 0.0
        %410 = vmatprep.subr.mxu0 0.0
        %411 = vmatpush1.xpose.msra.mxu0 0.0
        %412 = vmatprep.subr.mxu0 0.0
        %413 = vmatpush1.xpose.msra.mxu0 0.0
        %414 = vmatprep.subr.mxu0 0.0
        %415 = vmatpush1.xpose.msra.mxu0 0.0
        %416 = vmatprep.subr.mxu0 0.0
        %417 = vmatpush1.xpose.msra.mxu0 0.0
        %418 = vmatprep.subr.mxu0 0.0
        %419 = vmatpush1.xpose.msra.mxu0 0.0
        %420 = vmatprep.subr.mxu0 0.0
        %421 = vmatpush1.xpose.msra.mxu0 0.0
        %422 = vmatprep.subr.mxu0 0.0
        %423 = vmatpush1.xpose.msra.mxu0 0.0
        %424 = vmatprep.mubr.f32.mxu0 0.0
        %425 = vmatmul.mubr.f32.gmra.mrb[0].mxu0 %v349
        %v426 = vpop.f32.mrb[0].mxu0
        %v427 = vadd.f32 0.0, %v426
        %v428 = vpop.f32.mrb[0].mxu0
        %429 = vmatprep.mubr.f32.mxu0 0.0
        %430 = vmatmul.mubr.f32.gmra.mrb[0].mxu0 %v352
        %v431 = vpop.f32.mrb[0].mxu0
        %v432 = vadd.f32 0.0, %v431
        %v433 = vpop.f32.mrb[0].mxu0
        %434 = vdwg.mxu0
        %v435 = vsel %vm343, %v427, -inf
        %v436 = vsel %vm344, %v432, -inf
        %vm437 = vcmask 130048
        %v438 = vsel %vm437, %v435, -inf
        %439 = vmax.xlane.f32.xlu0 %v438
        %v440 = vpop.xlane.xlu0 %439
        %v441 = vsel %vm437, %v436, -inf
        %442 = vmax.xlane.f32.xlu0 %v441
        %v443 = vpop.xlane.xlu0 %442
        %v444 = vsub.f32 %v435, %v440
        %v445 = vsub.f32 %v436, %v443
        %v446 = vmul.f32 %v444, 1.442695
        %v447 = vpow.pop %v446
        %v448 = vmul.f32 %v445, 1.442695
        %v449 = vpow.pop %v448
        %v450 = vsel %vm437, %v447, 0.0
        %451 = vadd.xlane.f32.xlu0 %v450
        %v452 = vpop.xlane.xlu0 %451
        %v453 = vsel %vm437, %v449, 0.0
        %454 = vadd.xlane.f32.xlu0 %v453
        %v455 = vpop.xlane.xlu0 %454
        %v457 = vsel %vm437, %v447, 0
        %v460 = vsel %vm437, %v449, 0
        %462 = vmatprep.subr.mxu0 0.0
        %463 = vmatpush1.msra.mxu0 %v330
        %464 = vmatprep.subr.mxu0 0.0
        %465 = vmatpush1.msra.mxu0 %v335
        %466 = vmatprep.subr.mxu0 0.0
        %467 = vmatpush1.msra.mxu0 0.0
        %468 = vmatprep.subr.mxu0 0.0
        %469 = vmatpush1.msra.mxu0 0.0
        %470 = vmatprep.subr.mxu0 0.0
        %471 = vmatpush1.msra.mxu0 0.0
        %472 = vmatprep.subr.mxu0 0.0
        %473 = vmatpush1.msra.mxu0 0.0
        %474 = vmatprep.subr.mxu0 0.0
        %475 = vmatpush1.msra.mxu0 0.0
        %476 = vmatprep.subr.mxu0 0.0
        %477 = vmatpush1.msra.mxu0 0.0
        %478 = vmatprep.subr.mxu0 0.0
        %479 = vmatpush1.msra.mxu0 0.0
        %480 = vmatprep.subr.mxu0 0.0
        %481 = vmatpush1.msra.mxu0 0.0
        %482 = vmatprep.subr.mxu0 0.0
        %483 = vmatpush1.msra.mxu0 0.0
        %484 = vmatprep.subr.mxu0 0.0
        %485 = vmatpush1.msra.mxu0 0.0
        %486 = vmatprep.subr.mxu0 0.0
        %487 = vmatpush1.msra.mxu0 0.0
        %488 = vmatprep.subr.mxu0 0.0
        %489 = vmatpush1.msra.mxu0 0.0
        %490 = vmatprep.subr.mxu0 0.0
        %491 = vmatpush1.msra.mxu0 0.0
        %492 = vmatprep.subr.mxu0 0.0
        %493 = vmatpush1.msra.mxu0 0.0
        %494 = vmatprep.subr.mxu0 0.0
        %495 = vmatpush1.msra.mxu0 0.0
        %496 = vmatprep.subr.mxu0 0.0
        %497 = vmatpush1.msra.mxu0 0.0
        %498 = vmatprep.subr.mxu0 0.0
        %499 = vmatpush1.msra.mxu0 0.0
        %500 = vmatprep.subr.mxu0 0.0
        %501 = vmatpush1.msra.mxu0 0.0
        %502 = vmatprep.subr.mxu0 0.0
        %503 = vmatpush1.msra.mxu0 0.0
        %504 = vmatprep.subr.mxu0 0.0
        %505 = vmatpush1.msra.mxu0 0.0
        %506 = vmatprep.subr.mxu0 0.0
        %507 = vmatpush1.msra.mxu0 0.0
        %508 = vmatprep.subr.mxu0 0.0
        %509 = vmatpush1.msra.mxu0 0.0
        %510 = vmatprep.subr.mxu0 0.0
        %511 = vmatpush1.msra.mxu0 0.0
        %512 = vmatprep.subr.mxu0 0.0
        %513 = vmatpush1.msra.mxu0 0.0
        %514 = vmatprep.subr.mxu0 0.0
        %515 = vmatpush1.msra.mxu0 0.0
        %516 = vmatprep.subr.mxu0 0.0
        %517 = vmatpush1.msra.mxu0 0.0
        %518 = vmatprep.subr.mxu0 0.0
        %519 = vmatpush1.msra.mxu0 0.0
        %520 = vmatprep.subr.mxu0 0.0
        %521 = vmatpush1.msra.mxu0 0.0
        %522 = vmatprep.subr.mxu0 0.0
        %523 = vmatpush1.msra.mxu0 0.0
        %524 = vmatprep.subr.mxu0 0.0
        %525 = vmatpush1.msra.mxu0 0.0
        %526 = vmatprep.mubr.f32.mxu0 0.0
        %527 = vmatmul.mubr.f32.gmra.mrb[0].mxu0 %v457
        %v528 = vpop.f32.mrb[0].mxu0
        %v529 = vadd.f32 0.0, %v528
        %v530 = vpop.f32.mrb[0].mxu0
        %531 = vmatprep.mubr.f32.mxu0 0.0
        %532 = vmatmul.mubr.f32.gmra.mrb[0].mxu0 %v460
        %v533 = vpop.f32.mrb[0].mxu0
        %v534 = vadd.f32 0.0, %v533
        %v535 = vpop.f32.mrb[0].mxu0
        %536 = vdwg.mxu0
        %v537 = vrcp.pop %v452
        %v538 = vrcp.pop %v455
        %v539 = vmul.f32 %v529, %v537
        %v540 = vmul.f32 %v534, %v538
        %541 = vrot.lane.b32.xlu0 %v345, 96
        %v542 = vpop.permute.xlu0 %541
        %543 = vrot.lane.b32.xlu0 %v346, 96
        %v544 = vpop.permute.xlu0 %543
        %545 = vrot.lane.b32.xlu0 %v330, 96
        %v546 = vpop.permute.xlu0 %545
        %547 = vrot.lane.b32.xlu0 %v335, 96
        %v548 = vpop.permute.xlu0 %547
        %v549 = vsel %vm347, %v542, 0
        %v551 = vsel %vm347, %v544, 0
        %v553 = vsel %vm347, %v546, 0
        %v555 = vsel %vm347, %v548, 0
        %557 = vmatprep.subr.mxu0 0.0
        %558 = vmatpush1.xpose.msra.mxu0 %v553
        %559 = vmatprep.subr.mxu0 0.0
        %560 = vmatpush1.xpose.msra.mxu0 %v555
        %561 = vmatprep.subr.mxu0 0.0
        %562 = vmatpush1.xpose.msra.mxu0 0.0
        %563 = vmatprep.subr.mxu0 0.0
        %564 = vmatpush1.xpose.msra.mxu0 0.0
        %565 = vmatprep.subr.mxu0 0.0
        %566 = vmatpush1.xpose.msra.mxu0 0.0
        %567 = vmatprep.subr.mxu0 0.0
        %568 = vmatpush1.xpose.msra.mxu0 0.0
        %569 = vmatprep.subr.mxu0 0.0
        %570 = vmatpush1.xpose.msra.mxu0 0.0
        %571 = vmatprep.subr.mxu0 0.0
        %572 = vmatpush1.xpose.msra.mxu0 0.0
        %573 = vmatprep.subr.mxu0 0.0
        %574 = vmatpush1.xpose.msra.mxu0 0.0
        %575 = vmatprep.subr.mxu0 0.0
        %576 = vmatpush1.xpose.msra.mxu0 0.0
        %577 = vmatprep.subr.mxu0 0.0
        %578 = vmatpush1.xpose.msra.mxu0 0.0
        %579 = vmatprep.subr.mxu0 0.0
        %580 = vmatpush1.xpose.msra.mxu0 0.0
        %581 = vmatprep.subr.mxu0 0.0
        %582 = vmatpush1.xpose.msra.mxu0 0.0
        %583 = vmatprep.subr.mxu0 0.0
        %584 = vmatpush1.xpose.msra.mxu0 0.0
        %585 = vmatprep.subr.mxu0 0.0
        %586 = vmatpush1.xpose.msra.mxu0 0.0
        %587 = vmatprep.subr.mxu0 0.0
        %588 = vmatpush1.xpose.msra.mxu0 0.0
        %589 = vmatprep.subr.mxu0 0.0
        %590 = vmatpush1.xpose.msra.mxu0 0.0
        %591 = vmatprep.subr.mxu0 0.0
        %592 = vmatpush1.xpose.msra.mxu0 0.0
        %593 = vmatprep.subr.mxu0 0.0
        %594 = vmatpush1.xpose.msra.mxu0 0.0
        %595 = vmatprep.subr.mxu0 0.0
        %596 = vmatpush1.xpose.msra.mxu0 0.0
        %597 = vmatprep.subr.mxu0 0.0
        %598 = vmatpush1.xpose.msra.mxu0 0.0
        %599 = vmatprep.subr.mxu0 0.0
        %600 = vmatpush1.xpose.msra.mxu0 0.0
        %601 = vmatprep.subr.mxu0 0.0
        %602 = vmatpush1.xpose.msra.mxu0 0.0
        %603 = vmatprep.subr.mxu0 0.0
        %604 = vmatpush1.xpose.msra.mxu0 0.0
        %605 = vmatprep.subr.mxu0 0.0
        %606 = vmatpush1.xpose.msra.mxu0 0.0
        %607 = vmatprep.subr.mxu0 0.0
        %608 = vmatpush1.xpose.msra.mxu0 0.0
        %609 = vmatprep.subr.mxu0 0.0
        %610 = vmatpush1.xpose.msra.mxu0 0.0
        %611 = vmatprep.subr.mxu0 0.0
        %612 = vmatpush1.xpose.msra.mxu0 0.0
        %613 = vmatprep.subr.mxu0 0.0
        %614 = vmatpush1.xpose.msra.mxu0 0.0
        %615 = vmatprep.subr.mxu0 0.0
        %616 = vmatpush1.xpose.msra.mxu0 0.0
        %617 = vmatprep.subr.mxu0 0.0
        %618 = vmatpush1.xpose.msra.mxu0 0.0
        %619 = vmatprep.subr.mxu0 0.0
        %620 = vmatpush1.xpose.msra.mxu0 0.0
        %621 = vmatprep.mubr.f32.mxu0 0.0
        %622 = vmatmul.mubr.f32.gmra.mrb[0].mxu0 %v549
        %v623 = vpop.f32.mrb[0].mxu0
        %v624 = vadd.f32 0.0, %v623
        %v625 = vpop.f32.mrb[0].mxu0
        %626 = vmatprep.mubr.f32.mxu0 0.0
        %627 = vmatmul.mubr.f32.gmra.mrb[0].mxu0 %v551
        %v628 = vpop.f32.mrb[0].mxu0
        %v629 = vadd.f32 0.0, %v628
        %v630 = vpop.f32.mrb[0].mxu0
        %631 = vdwg.mxu0
        %v632 = vsel %vm343, %v624, -inf
        %v633 = vsel %vm344, %v629, -inf
        %v634 = vsel %vm437, %v632, -inf
        %635 = vmax.xlane.f32.xlu0 %v634
        %v636 = vpop.xlane.xlu0 %635
        %v637 = vsel %vm437, %v633, -inf
        %638 = vmax.xlane.f32.xlu0 %v637
        %v639 = vpop.xlane.xlu0 %638
        %v640 = vsub.f32 %v632, %v636
        %v641 = vsub.f32 %v633, %v639
        %v642 = vmul.f32 %v640, 1.442695
        %v643 = vpow.pop %v642
        %v644 = vmul.f32 %v641, 1.442695
        %v645 = vpow.pop %v644
        %v646 = vsel %vm437, %v643, 0.0
        %647 = vadd.xlane.f32.xlu0 %v646
        %v648 = vpop.xlane.xlu0 %647
        %v649 = vsel %vm437, %v645, 0.0
        %650 = vadd.xlane.f32.xlu0 %v649
        %v651 = vpop.xlane.xlu0 %650
        %v655 = vsel %vm437, %v643, 0
        %v658 = vsel %vm437, %v645, 0
        %660 = vmatprep.subr.mxu0 0.0
        %661 = vmatpush1.msra.mxu0 %v546
        %662 = vmatprep.subr.mxu0 0.0
        %663 = vmatpush1.msra.mxu0 %v548
        %664 = vmatprep.subr.mxu0 0.0
        %665 = vmatpush1.msra.mxu0 0.0
        %666 = vmatprep.subr.mxu0 0.0
        %667 = vmatpush1.msra.mxu0 0.0
        %668 = vmatprep.subr.mxu0 0.0
        %669 = vmatpush1.msra.mxu0 0.0
        %670 = vmatprep.subr.mxu0 0.0
        %671 = vmatpush1.msra.mxu0 0.0
        %672 = vmatprep.subr.mxu0 0.0
        %673 = vmatpush1.msra.mxu0 0.0
        %674 = vmatprep.subr.mxu0 0.0
        %675 = vmatpush1.msra.mxu0 0.0
        %676 = vmatprep.subr.mxu0 0.0
        %677 = vmatpush1.msra.mxu0 0.0
        %678 = vmatprep.subr.mxu0 0.0
        %679 = vmatpush1.msra.mxu0 0.0
        %680 = vmatprep.subr.mxu0 0.0
        %681 = vmatpush1.msra.mxu0 0.0
        %682 = vmatprep.subr.mxu0 0.0
        %683 = vmatpush1.msra.mxu0 0.0
        %684 = vmatprep.subr.mxu0 0.0
        %685 = vmatpush1.msra.mxu0 0.0
        %686 = vmatprep.subr.mxu0 0.0
        %687 = vmatpush1.msra.mxu0 0.0
        %688 = vmatprep.subr.mxu0 0.0
        %689 = vmatpush1.msra.mxu0 0.0
        %690 = vmatprep.subr.mxu0 0.0
        %691 = vmatpush1.msra.mxu0 0.0
        %692 = vmatprep.subr.mxu0 0.0
        %693 = vmatpush1.msra.mxu0 0.0
        %694 = vmatprep.subr.mxu0 0.0
        %695 = vmatpush1.msra.mxu0 0.0
        %696 = vmatprep.subr.mxu0 0.0
        %697 = vmatpush1.msra.mxu0 0.0
        %698 = vmatprep.subr.mxu0 0.0
        %699 = vmatpush1.msra.mxu0 0.0
        %700 = vmatprep.subr.mxu0 0.0
        %701 = vmatpush1.msra.mxu0 0.0
        %702 = vmatprep.subr.mxu0 0.0
        %703 = vmatpush1.msra.mxu0 0.0
        %704 = vmatprep.subr.mxu0 0.0
        %705 = vmatpush1.msra.mxu0 0.0
        %706 = vmatprep.subr.mxu0 0.0
        %707 = vmatpush1.msra.mxu0 0.0
        %708 = vmatprep.subr.mxu0 0.0
        %709 = vmatpush1.msra.mxu0 0.0
        %710 = vmatprep.subr.mxu0 0.0
        %711 = vmatpush1.msra.mxu0 0.0
        %712 = vmatprep.subr.mxu0 0.0
        %713 = vmatpush1.msra.mxu0 0.0
        %714 = vmatprep.subr.mxu0 0.0
        %715 = vmatpush1.msra.mxu0 0.0
        %716 = vmatprep.subr.mxu0 0.0
        %717 = vmatpush1.msra.mxu0 0.0
        %718 = vmatprep.subr.mxu0 0.0
        %719 = vmatpush1.msra.mxu0 0.0
        %720 = vmatprep.subr.mxu0 0.0
        %721 = vmatpush1.msra.mxu0 0.0
        %722 = vmatprep.subr.mxu0 0.0
        %723 = vmatpush1.msra.mxu0 0.0
        %724 = vmatprep.mubr.f32.mxu0 0.0
        %725 = vmatmul.mubr.f32.gmra.mrb[0].mxu0 %v655
        %v726 = vpop.f32.mrb[0].mxu0
        %v727 = vadd.f32 0.0, %v726
        %v728 = vpop.f32.mrb[0].mxu0
        %729 = vmatprep.mubr.f32.mxu0 0.0
        %730 = vmatmul.mubr.f32.gmra.mrb[0].mxu0 %v658
        %v731 = vpop.f32.mrb[0].mxu0
        %v732 = vadd.f32 0.0, %v731
        %v733 = vpop.f32.mrb[0].mxu0
        %734 = vdwg.mxu0
        %v735 = vrcp.pop %v648
        %v736 = vrcp.pop %v651
        %v737 = vmul.f32 %v727, %v735
        %v738 = vmul.f32 %v732, %v736
        %739 = vrot.lane.b32.xlu0 %v345, 64
        %v740 = vpop.permute.xlu0 %739
        %741 = vrot.lane.b32.xlu0 %v346, 64
        %v742 = vpop.permute.xlu0 %741
        %743 = vrot.lane.b32.xlu0 %v330, 64
        %v744 = vpop.permute.xlu0 %743
        %745 = vrot.lane.b32.xlu0 %v335, 64
        %v746 = vpop.permute.xlu0 %745
        %v747 = vsel %vm347, %v740, 0
        %v749 = vsel %vm347, %v742, 0
        %v751 = vsel %vm347, %v744, 0
        %v753 = vsel %vm347, %v746, 0
        %755 = vmatprep.subr.mxu0 0.0
        %756 = vmatpush1.xpose.msra.mxu0 %v751
        %757 = vmatprep.subr.mxu0 0.0
        %758 = vmatpush1.xpose.msra.mxu0 %v753
        %759 = vmatprep.subr.mxu0 0.0
        %760 = vmatpush1.xpose.msra.mxu0 0.0
        %761 = vmatprep.subr.mxu0 0.0
        %762 = vmatpush1.xpose.msra.mxu0 0.0
        %763 = vmatprep.subr.mxu0 0.0
        %764 = vmatpush1.xpose.msra.mxu0 0.0
        %765 = vmatprep.subr.mxu0 0.0
        %766 = vmatpush1.xpose.msra.mxu0 0.0
        %767 = vmatprep.subr.mxu0 0.0
        %768 = vmatpush1.xpose.msra.mxu0 0.0
        %769 = vmatprep.subr.mxu0 0.0
        %770 = vmatpush1.xpose.msra.mxu0 0.0
        %771 = vmatprep.subr.mxu0 0.0
        %772 = vmatpush1.xpose.msra.mxu0 0.0
        %773 = vmatprep.subr.mxu0 0.0
        %774 = vmatpush1.xpose.msra.mxu0 0.0
        %775 = vmatprep.subr.mxu0 0.0
        %776 = vmatpush1.xpose.msra.mxu0 0.0
        %777 = vmatprep.subr.mxu0 0.0
        %778 = vmatpush1.xpose.msra.mxu0 0.0
        %779 = vmatprep.subr.mxu0 0.0
        %780 = vmatpush1.xpose.msra.mxu0 0.0
        %781 = vmatprep.subr.mxu0 0.0
        %782 = vmatpush1.xpose.msra.mxu0 0.0
        %783 = vmatprep.subr.mxu0 0.0
        %784 = vmatpush1.xpose.msra.mxu0 0.0
        %785 = vmatprep.subr.mxu0 0.0
        %786 = vmatpush1.xpose.msra.mxu0 0.0
        %787 = vmatprep.subr.mxu0 0.0
        %788 = vmatpush1.xpose.msra.mxu0 0.0
        %789 = vmatprep.subr.mxu0 0.0
        %790 = vmatpush1.xpose.msra.mxu0 0.0
        %791 = vmatprep.subr.mxu0 0.0
        %792 = vmatpush1.xpose.msra.mxu0 0.0
        %793 = vmatprep.subr.mxu0 0.0
        %794 = vmatpush1.xpose.msra.mxu0 0.0
        %795 = vmatprep.subr.mxu0 0.0
        %796 = vmatpush1.xpose.msra.mxu0 0.0
        %797 = vmatprep.subr.mxu0 0.0
        %798 = vmatpush1.xpose.msra.mxu0 0.0
        %799 = vmatprep.subr.mxu0 0.0
        %800 = vmatpush1.xpose.msra.mxu0 0.0
        %801 = vmatprep.subr.mxu0 0.0
        %802 = vmatpush1.xpose.msra.mxu0 0.0
        %803 = vmatprep.subr.mxu0 0.0
        %804 = vmatpush1.xpose.msra.mxu0 0.0
        %805 = vmatprep.subr.mxu0 0.0
        %806 = vmatpush1.xpose.msra.mxu0 0.0
        %807 = vmatprep.subr.mxu0 0.0
        %808 = vmatpush1.xpose.msra.mxu0 0.0
        %809 = vmatprep.subr.mxu0 0.0
        %810 = vmatpush1.xpose.msra.mxu0 0.0
        %811 = vmatprep.subr.mxu0 0.0
        %812 = vmatpush1.xpose.msra.mxu0 0.0
        %813 = vmatprep.subr.mxu0 0.0
        %814 = vmatpush1.xpose.msra.mxu0 0.0
        %815 = vmatprep.subr.mxu0 0.0
        %816 = vmatpush1.xpose.msra.mxu0 0.0
        %817 = vmatprep.subr.mxu0 0.0
        %818 = vmatpush1.xpose.msra.mxu0 0.0
        %819 = vmatprep.mubr.f32.mxu0 0.0
        %820 = vmatmul.mubr.f32.gmra.mrb[0].mxu0 %v747
        %v821 = vpop.f32.mrb[0].mxu0
        %v822 = vadd.f32 0.0, %v821
        %v823 = vpop.f32.mrb[0].mxu0
        %824 = vmatprep.mubr.f32.mxu0 0.0
        %825 = vmatmul.mubr.f32.gmra.mrb[0].mxu0 %v749
        %v826 = vpop.f32.mrb[0].mxu0
        %v827 = vadd.f32 0.0, %v826
        %v828 = vpop.f32.mrb[0].mxu0
        %829 = vdwg.mxu0
        %v830 = vsel %vm343, %v822, -inf
        %v831 = vsel %vm344, %v827, -inf
        %v832 = vsel %vm437, %v830, -inf
        %833 = vmax.xlane.f32.xlu0 %v832
        %v834 = vpop.xlane.xlu0 %833
        %v835 = vsel %vm437, %v831, -inf
        %836 = vmax.xlane.f32.xlu0 %v835
        %v837 = vpop.xlane.xlu0 %836
        %v838 = vsub.f32 %v830, %v834
        %v839 = vsub.f32 %v831, %v837
        %v840 = vmul.f32 %v838, 1.442695
        %v841 = vpow.pop %v840
        %v842 = vmul.f32 %v839, 1.442695
        %v843 = vpow.pop %v842
        %v844 = vsel %vm437, %v841, 0.0
        %845 = vadd.xlane.f32.xlu0 %v844
        %v846 = vpop.xlane.xlu0 %845
        %v847 = vsel %vm437, %v843, 0.0
        %848 = vadd.xlane.f32.xlu0 %v847
        %v849 = vpop.xlane.xlu0 %848
        %v853 = vsel %vm437, %v841, 0
        %v856 = vsel %vm437, %v843, 0
        %858 = vmatprep.subr.mxu0 0.0
        %859 = vmatpush1.msra.mxu0 %v744
        %860 = vmatprep.subr.mxu0 0.0
        %861 = vmatpush1.msra.mxu0 %v746
        %862 = vmatprep.subr.mxu0 0.0
        %863 = vmatpush1.msra.mxu0 0.0
        %864 = vmatprep.subr.mxu0 0.0
        %865 = vmatpush1.msra.mxu0 0.0
        %866 = vmatprep.subr.mxu0 0.0
        %867 = vmatpush1.msra.mxu0 0.0
        %868 = vmatprep.subr.mxu0 0.0
        %869 = vmatpush1.msra.mxu0 0.0
        %870 = vmatprep.subr.mxu0 0.0
        %871 = vmatpush1.msra.mxu0 0.0
        %872 = vmatprep.subr.mxu0 0.0
        %873 = vmatpush1.msra.mxu0 0.0
        %874 = vmatprep.subr.mxu0 0.0
        %875 = vmatpush1.msra.mxu0 0.0
        %876 = vmatprep.subr.mxu0 0.0
        %877 = vmatpush1.msra.mxu0 0.0
        %878 = vmatprep.subr.mxu0 0.0
        %879 = vmatpush1.msra.mxu0 0.0
        %880 = vmatprep.subr.mxu0 0.0
        %881 = vmatpush1.msra.mxu0 0.0
        %882 = vmatprep.subr.mxu0 0.0
        %883 = vmatpush1.msra.mxu0 0.0
        %884 = vmatprep.subr.mxu0 0.0
        %885 = vmatpush1.msra.mxu0 0.0
        %886 = vmatprep.subr.mxu0 0.0
        %887 = vmatpush1.msra.mxu0 0.0
        %888 = vmatprep.subr.mxu0 0.0
        %889 = vmatpush1.msra.mxu0 0.0
        %890 = vmatprep.subr.mxu0 0.0
        %891 = vmatpush1.msra.mxu0 0.0
        %892 = vmatprep.subr.mxu0 0.0
        %893 = vmatpush1.msra.mxu0 0.0
        %894 = vmatprep.subr.mxu0 0.0
        %895 = vmatpush1.msra.mxu0 0.0
        %896 = vmatprep.subr.mxu0 0.0
        %897 = vmatpush1.msra.mxu0 0.0
        %898 = vmatprep.subr.mxu0 0.0
        %899 = vmatpush1.msra.mxu0 0.0
        %900 = vmatprep.subr.mxu0 0.0
        %901 = vmatpush1.msra.mxu0 0.0
        %902 = vmatprep.subr.mxu0 0.0
        %903 = vmatpush1.msra.mxu0 0.0
        %904 = vmatprep.subr.mxu0 0.0
        %905 = vmatpush1.msra.mxu0 0.0
        %906 = vmatprep.subr.mxu0 0.0
        %907 = vmatpush1.msra.mxu0 0.0
        %908 = vmatprep.subr.mxu0 0.0
        %909 = vmatpush1.msra.mxu0 0.0
        %910 = vmatprep.subr.mxu0 0.0
        %911 = vmatpush1.msra.mxu0 0.0
        %912 = vmatprep.subr.mxu0 0.0
        %913 = vmatpush1.msra.mxu0 0.0
        %914 = vmatprep.subr.mxu0 0.0
        %915 = vmatpush1.msra.mxu0 0.0
        %916 = vmatprep.subr.mxu0 0.0
        %917 = vmatpush1.msra.mxu0 0.0
        %918 = vmatprep.subr.mxu0 0.0
        %919 = vmatpush1.msra.mxu0 0.0
        %920 = vmatprep.subr.mxu0 0.0
        %921 = vmatpush1.msra.mxu0 0.0
        %922 = vmatprep.mubr.f32.mxu0 0.0
        %923 = vmatmul.mubr.f32.gmra.mrb[0].mxu0 %v853
        %v924 = vpop.f32.mrb[0].mxu0
        %v925 = vadd.f32 0.0, %v924
        %v926 = vpop.f32.mrb[0].mxu0
        %927 = vmatprep.mubr.f32.mxu0 0.0
        %928 = vmatmul.mubr.f32.gmra.mrb[0].mxu0 %v856
        %v929 = vpop.f32.mrb[0].mxu0
        %v930 = vadd.f32 0.0, %v929
        %v931 = vpop.f32.mrb[0].mxu0
        %932 = vdwg.mxu0
        %v933 = vrcp.pop %v846
        %v934 = vrcp.pop %v849
        %v935 = vmul.f32 %v925, %v933
        %v936 = vmul.f32 %v930, %v934
        %937 = vrot.lane.b32.xlu0 %v345, 32
        %v938 = vpop.permute.xlu0 %937
        %939 = vrot.lane.b32.xlu0 %v346, 32
        %v940 = vpop.permute.xlu0 %939
        %941 = vrot.lane.b32.xlu0 %v330, 32
        %v942 = vpop.permute.xlu0 %941
        %943 = vrot.lane.b32.xlu0 %v335, 32
        %v944 = vpop.permute.xlu0 %943
        %v945 = vsel %vm347, %v938, 0
        %v947 = vsel %vm347, %v940, 0
        %v949 = vsel %vm347, %v942, 0
        %v951 = vsel %vm347, %v944, 0
        %953 = vmatprep.subr.mxu0 0.0
        %954 = vmatpush1.xpose.msra.mxu0 %v949
        %955 = vmatprep.subr.mxu0 0.0
        %956 = vmatpush1.xpose.msra.mxu0 %v951
        %957 = vmatprep.subr.mxu0 0.0
        %958 = vmatpush1.xpose.msra.mxu0 0.0
        %959 = vmatprep.subr.mxu0 0.0
        %960 = vmatpush1.xpose.msra.mxu0 0.0
        %961 = vmatprep.subr.mxu0 0.0
        %962 = vmatpush1.xpose.msra.mxu0 0.0
        %963 = vmatprep.subr.mxu0 0.0
        %964 = vmatpush1.xpose.msra.mxu0 0.0
        %965 = vmatprep.subr.mxu0 0.0
        %966 = vmatpush1.xpose.msra.mxu0 0.0
        %967 = vmatprep.subr.mxu0 0.0
        %968 = vmatpush1.xpose.msra.mxu0 0.0
        %969 = vmatprep.subr.mxu0 0.0
        %970 = vmatpush1.xpose.msra.mxu0 0.0
        %971 = vmatprep.subr.mxu0 0.0
        %972 = vmatpush1.xpose.msra.mxu0 0.0
        %973 = vmatprep.subr.mxu0 0.0
        %974 = vmatpush1.xpose.msra.mxu0 0.0
        %975 = vmatprep.subr.mxu0 0.0
        %976 = vmatpush1.xpose.msra.mxu0 0.0
        %977 = vmatprep.subr.mxu0 0.0
        %978 = vmatpush1.xpose.msra.mxu0 0.0
        %979 = vmatprep.subr.mxu0 0.0
        %980 = vmatpush1.xpose.msra.mxu0 0.0
        %981 = vmatprep.subr.mxu0 0.0
        %982 = vmatpush1.xpose.msra.mxu0 0.0
        %983 = vmatprep.subr.mxu0 0.0
        %984 = vmatpush1.xpose.msra.mxu0 0.0
        %985 = vmatprep.subr.mxu0 0.0
        %986 = vmatpush1.xpose.msra.mxu0 0.0
        %987 = vmatprep.subr.mxu0 0.0
        %988 = vmatpush1.xpose.msra.mxu0 0.0
        %989 = vmatprep.subr.mxu0 0.0
        %990 = vmatpush1.xpose.msra.mxu0 0.0
        %991 = vmatprep.subr.mxu0 0.0
        %992 = vmatpush1.xpose.msra.mxu0 0.0
        %993 = vmatprep.subr.mxu0 0.0
        %994 = vmatpush1.xpose.msra.mxu0 0.0
        %995 = vmatprep.subr.mxu0 0.0
        %996 = vmatpush1.xpose.msra.mxu0 0.0
        %997 = vmatprep.subr.mxu0 0.0
        %998 = vmatpush1.xpose.msra.mxu0 0.0
        %999 = vmatprep.subr.mxu0 0.0
        %1000 = vmatpush1.xpose.msra.mxu0 0.0
        %1001 = vmatprep.subr.mxu0 0.0
        %1002 = vmatpush1.xpose.msra.mxu0 0.0
        %1003 = vmatprep.subr.mxu0 0.0
        %1004 = vmatpush1.xpose.msra.mxu0 0.0
        %1005 = vmatprep.subr.mxu0 0.0
        %1006 = vmatpush1.xpose.msra.mxu0 0.0
        %1007 = vmatprep.subr.mxu0 0.0
        %1008 = vmatpush1.xpose.msra.mxu0 0.0
        %1009 = vmatprep.subr.mxu0 0.0
        %1010 = vmatpush1.xpose.msra.mxu0 0.0
        %1011 = vmatprep.subr.mxu0 0.0
        %1012 = vmatpush1.xpose.msra.mxu0 0.0
        %1013 = vmatprep.subr.mxu0 0.0
        %1014 = vmatpush1.xpose.msra.mxu0 0.0
        %1015 = vmatprep.subr.mxu0 0.0
        %1016 = vmatpush1.xpose.msra.mxu0 0.0
        %1017 = vmatprep.mubr.f32.mxu0 0.0
        %1018 = vmatmul.mubr.f32.gmra.mrb[0].mxu0 %v945
        %v1019 = vpop.f32.mrb[0].mxu0
        %v1020 = vadd.f32 0.0, %v1019
        %v1021 = vpop.f32.mrb[0].mxu0
        %1022 = vmatprep.mubr.f32.mxu0 0.0
        %1023 = vmatmul.mubr.f32.gmra.mrb[0].mxu0 %v947
        %v1024 = vpop.f32.mrb[0].mxu0
        %v1025 = vadd.f32 0.0, %v1024
        %v1026 = vpop.f32.mrb[0].mxu0
        %1027 = vdwg.mxu0
        %v1028 = vsel %vm343, %v1020, -inf
        %v1029 = vsel %vm344, %v1025, -inf
        %v1030 = vsel %vm437, %v1028, -inf
        %1031 = vmax.xlane.f32.xlu0 %v1030
        %v1032 = vpop.xlane.xlu0 %1031
        %v1033 = vsel %vm437, %v1029, -inf
        %1034 = vmax.xlane.f32.xlu0 %v1033
        %v1035 = vpop.xlane.xlu0 %1034
        %v1036 = vsub.f32 %v1028, %v1032
        %v1037 = vsub.f32 %v1029, %v1035
        %v1038 = vmul.f32 %v1036, 1.442695
        %v1039 = vpow.pop %v1038
        %v1040 = vmul.f32 %v1037, 1.442695
        %v1041 = vpow.pop %v1040
        %v1042 = vsel %vm437, %v1039, 0.0
        %1043 = vadd.xlane.f32.xlu0 %v1042
        %v1044 = vpop.xlane.xlu0 %1043
        %v1045 = vsel %vm437, %v1041, 0.0
        %1046 = vadd.xlane.f32.xlu0 %v1045
        %v1047 = vpop.xlane.xlu0 %1046
        %v1051 = vsel %vm437, %v1039, 0
        %v1054 = vsel %vm437, %v1041, 0
        %1056 = vmatprep.subr.mxu0 0.0
        %1057 = vmatpush1.msra.mxu0 %v942
        %1058 = vmatprep.subr.mxu0 0.0
        %1059 = vmatpush1.msra.mxu0 %v944
        %1060 = vmatprep.subr.mxu0 0.0
        %1061 = vmatpush1.msra.mxu0 0.0
        %1062 = vmatprep.subr.mxu0 0.0
        %1063 = vmatpush1.msra.mxu0 0.0
        %1064 = vmatprep.subr.mxu0 0.0
        %1065 = vmatpush1.msra.mxu0 0.0
        %1066 = vmatprep.subr.mxu0 0.0
        %1067 = vmatpush1.msra.mxu0 0.0
        %1068 = vmatprep.subr.mxu0 0.0
        %1069 = vmatpush1.msra.mxu0 0.0
        %1070 = vmatprep.subr.mxu0 0.0
        %1071 = vmatpush1.msra.mxu0 0.0
        %1072 = vmatprep.subr.mxu0 0.0
        %1073 = vmatpush1.msra.mxu0 0.0
        %1074 = vmatprep.subr.mxu0 0.0
        %1075 = vmatpush1.msra.mxu0 0.0
        %1076 = vmatprep.subr.mxu0 0.0
        %1077 = vmatpush1.msra.mxu0 0.0
        %1078 = vmatprep.subr.mxu0 0.0
        %1079 = vmatpush1.msra.mxu0 0.0
        %1080 = vmatprep.subr.mxu0 0.0
        %1081 = vmatpush1.msra.mxu0 0.0
        %1082 = vmatprep.subr.mxu0 0.0
        %1083 = vmatpush1.msra.mxu0 0.0
        %1084 = vmatprep.subr.mxu0 0.0
        %1085 = vmatpush1.msra.mxu0 0.0
        %1086 = vmatprep.subr.mxu0 0.0
        %1087 = vmatpush1.msra.mxu0 0.0
        %1088 = vmatprep.subr.mxu0 0.0
        %1089 = vmatpush1.msra.mxu0 0.0
        %1090 = vmatprep.subr.mxu0 0.0
        %1091 = vmatpush1.msra.mxu0 0.0
        %1092 = vmatprep.subr.mxu0 0.0
        %1093 = vmatpush1.msra.mxu0 0.0
        %1094 = vmatprep.subr.mxu0 0.0
        %1095 = vmatpush1.msra.mxu0 0.0
        %1096 = vmatprep.subr.mxu0 0.0
        %1097 = vmatpush1.msra.mxu0 0.0
        %1098 = vmatprep.subr.mxu0 0.0
        %1099 = vmatpush1.msra.mxu0 0.0
        %1100 = vmatprep.subr.mxu0 0.0
        %1101 = vmatpush1.msra.mxu0 0.0
        %1102 = vmatprep.subr.mxu0 0.0
        %1103 = vmatpush1.msra.mxu0 0.0
        %1104 = vmatprep.subr.mxu0 0.0
        %1105 = vmatpush1.msra.mxu0 0.0
        %1106 = vmatprep.subr.mxu0 0.0
        %1107 = vmatpush1.msra.mxu0 0.0
        %1108 = vmatprep.subr.mxu0 0.0
        %1109 = vmatpush1.msra.mxu0 0.0
        %1110 = vmatprep.subr.mxu0 0.0
        %1111 = vmatpush1.msra.mxu0 0.0
        %1112 = vmatprep.subr.mxu0 0.0
        %1113 = vmatpush1.msra.mxu0 0.0
        %1114 = vmatprep.subr.mxu0 0.0
        %1115 = vmatpush1.msra.mxu0 0.0
        %1116 = vmatprep.subr.mxu0 0.0
        %1117 = vmatpush1.msra.mxu0 0.0
        %1118 = vmatprep.subr.mxu0 0.0
        %1119 = vmatpush1.msra.mxu0 0.0
        %1120 = vmatprep.mubr.f32.mxu0 0.0
        %1121 = vmatmul.mubr.f32.gmra.mrb[0].mxu0 %v1051
        %v1122 = vpop.f32.mrb[0].mxu0
        %v1123 = vadd.f32 0.0, %v1122
        %v1124 = vpop.f32.mrb[0].mxu0
        %1125 = vmatprep.mubr.f32.mxu0 0.0
        %1126 = vmatmul.mubr.f32.gmra.mrb[0].mxu0 %v1054
        %v1127 = vpop.f32.mrb[0].mxu0
        %v1128 = vadd.f32 0.0, %v1127
        %v1129 = vpop.f32.mrb[0].mxu0
        %1130 = vdwg.mxu0
        %v1131 = vrcp.pop %v1044
        %v1132 = vrcp.pop %v1047
        %v1133 = vmul.f32 %v1123, %v1131
        %v1134 = vmul.f32 %v1128, %v1132
        %1137 = vrot.lane.b32.xlu0 %v737, 32
        %v1138 = vpop.permute.xlu0 %1137
        %1139 = vrot.lane.b32.xlu0 %v738, 32
        %v1140 = vpop.permute.xlu0 %1139
        %1145 = vrot.lane.b32.xlu0 %v935, 64
        %v1146 = vpop.permute.xlu0 %1145
        %1147 = vrot.lane.b32.xlu0 %v936, 64
        %v1148 = vpop.permute.xlu0 %1147
        %1153 = vrot.lane.b32.xlu0 %v1133, 96
        %v1154 = vpop.permute.xlu0 %1153
        %1155 = vrot.lane.b32.xlu0 %v1134, 96
        %v1156 = vpop.permute.xlu0 %1155
        %v1159 = vsel %vm347, %v539, %v1138
        %v1160 = vsel %vm347, %v540, %v1140
        %vm1161 = vcmask 523264
        %v1162 = vsel %vm1161, %v1159, %v1146
        %v1163 = vsel %vm1161, %v1160, %v1148
        %vm1164 = vcmask 785408
        %v1165 = vsel %vm1164, %v1162, %v1154
        %v1166 = vsel %vm1164, %v1163, %v1156
        %v1167 = vld [vmem:[#allocation7] sm:$0xff]
        %v1168 = vld [vmem:[#allocation7 + $0x8] sm:$0xff]
        %v1169 = vld [vmem:[#allocation7 + $0x10] sm:$0xff]
        %v1170 = vld [vmem:[#allocation7 + $0x18] sm:$0xff]
        %v1171 = vld [vmem:[#allocation7 + $0x20] sm:$0xff]
        %v1172 = vld [vmem:[#allocation7 + $0x28] sm:$0xff]
        %v1173 = vld [vmem:[#allocation7 + $0x30] sm:$0xff]
        %v1174 = vld [vmem:[#allocation7 + $0x38] sm:$0xff]
        %v1175 = vld [vmem:[#allocation7 + $0x40] sm:$0xff]
        %v1176 = vld [vmem:[#allocation7 + $0x48] sm:$0xff]
        %v1177 = vld [vmem:[#allocation7 + $0x50] sm:$0xff]
        %v1178 = vld [vmem:[#allocation7 + $0x58] sm:$0xff]
        %v1179 = vld [vmem:[#allocation7 + $0x60] sm:$0xff]
        %v1180 = vld [vmem:[#allocation7 + $0x68] sm:$0xff]
        %v1181 = vld [vmem:[#allocation7 + $0x70] sm:$0xff]
        %v1182 = vld [vmem:[#allocation7 + $0x78] sm:$0xff]
        %v1183 = vld [vmem:[%s3] sm:$0x1]
        %v1185 = vlaneseq
        %v1186 = vshrl.u32 %v1185, 7
        %v1187 = vsub.s32 0, %v1186
        %v1188 = vrot.slane %v1183, %v1187
        %1190 = vmatprep.subr.mxu0 0.0
        %1191 = vmatpush1.msra.mxu0 %v1167
        %1192 = vmatprep.subr.mxu0 0.0
        %1193 = vmatpush1.msra.mxu0 %v1168
        %1194 = vmatprep.subr.mxu0 0.0
        %1195 = vmatpush1.msra.mxu0 %v1169
        %1196 = vmatprep.subr.mxu0 0.0
        %1197 = vmatpush1.msra.mxu0 %v1170
        %1198 = vmatprep.subr.mxu0 0.0
        %1199 = vmatpush1.msra.mxu0 %v1171
        %1200 = vmatprep.subr.mxu0 0.0
        %1201 = vmatpush1.msra.mxu0 %v1172
        %1202 = vmatprep.subr.mxu0 0.0
        %1203 = vmatpush1.msra.mxu0 %v1173
        %1204 = vmatprep.subr.mxu0 0.0
        %1205 = vmatpush1.msra.mxu0 %v1174
        %1206 = vmatprep.subr.mxu0 0.0
        %1207 = vmatpush1.msra.mxu0 %v1175
        %1208 = vmatprep.subr.mxu0 0.0
        %1209 = vmatpush1.msra.mxu0 %v1176
        %1210 = vmatprep.subr.mxu0 0.0
        %1211 = vmatpush1.msra.mxu0 %v1177
        %1212 = vmatprep.subr.mxu0 0.0
        %1213 = vmatpush1.msra.mxu0 %v1178
        %1214 = vmatprep.subr.mxu0 0.0
        %1215 = vmatpush1.msra.mxu0 %v1179
        %1216 = vmatprep.subr.mxu0 0.0
        %1217 = vmatpush1.msra.mxu0 %v1180
        %1218 = vmatprep.subr.mxu0 0.0
        %1219 = vmatpush1.msra.mxu0 %v1181
        %1220 = vmatprep.subr.mxu0 0.0
        %1221 = vmatpush1.msra.mxu0 %v1182
        %1222 = vmatprep.subr.mxu0 0.0
        %1223 = vmatpush1.msra.mxu0 0.0
        %1224 = vmatprep.subr.mxu0 0.0
        %1225 = vmatpush1.msra.mxu0 0.0
        %1226 = vmatprep.subr.mxu0 0.0
        %1227 = vmatpush1.msra.mxu0 0.0
        %1228 = vmatprep.subr.mxu0 0.0
        %1229 = vmatpush1.msra.mxu0 0.0
        %1230 = vmatprep.subr.mxu0 0.0
        %1231 = vmatpush1.msra.mxu0 0.0
        %1232 = vmatprep.subr.mxu0 0.0
        %1233 = vmatpush1.msra.mxu0 0.0
        %1234 = vmatprep.subr.mxu0 0.0
        %1235 = vmatpush1.msra.mxu0 0.0
        %1236 = vmatprep.subr.mxu0 0.0
        %1237 = vmatpush1.msra.mxu0 0.0
        %1238 = vmatprep.subr.mxu0 0.0
        %1239 = vmatpush1.msra.mxu0 0.0
        %1240 = vmatprep.subr.mxu0 0.0
        %1241 = vmatpush1.msra.mxu0 0.0
        %1242 = vmatprep.subr.mxu0 0.0
        %1243 = vmatpush1.msra.mxu0 0.0
        %1244 = vmatprep.subr.mxu0 0.0
        %1245 = vmatpush1.msra.mxu0 0.0
        %1246 = vmatprep.subr.mxu0 0.0
        %1247 = vmatpush1.msra.mxu0 0.0
        %1248 = vmatprep.subr.mxu0 0.0
        %1249 = vmatpush1.msra.mxu0 0.0
        %1250 = vmatprep.subr.mxu0 0.0
        %1251 = vmatpush1.msra.mxu0 0.0
        %1252 = vmatprep.subr.mxu0 0.0
        %1253 = vmatpush1.msra.mxu0 0.0
        %1254 = vmatprep.mubr.f32.mxu0 0.0
        %1255 = vmatmul.mubr.f32.gmra.mrb[0].mxu0 %v1165
        %v1256 = vpop.f32.mrb[0].mxu0
        %v1257 = vadd.f32 %v1188, %v1256
        %v1258 = vpop.f32.mrb[0].mxu0
        %1259 = vmatprep.mubr.f32.mxu0 0.0
        %1260 = vmatmul.mubr.f32.gmra.mrb[0].mxu0 %v1166
        %v1261 = vpop.f32.mrb[0].mxu0
        %v1262 = vadd.f32 %v1188, %v1261
        %v1263 = vpop.f32.mrb[0].mxu0
        %1264 = vdwg.mxu0
        %1265 = vst [vmem:[%s244] sm:$0xff] %v1257
        %1266 = vst [vmem:[%s244 + $0x8] sm:$0xff] %v1262
        %s1267 = sand.u32 %s119, 1
        %s1268 = scalar_lea.sflag [#allocation4], %s1267
        %s1269 = sand.u32 %s119, 1
        %s1270 = smul.addr %s1269, 16
        %s1271 = scalar_lea.vmem [#allocation8], %s1270
        // Predicated region
        $region49: #{tpu_custom_call.1} parent=35 // pred_check
          %p1272 = pneg %p129
        $region50: #{tpu_custom_call.1} parent=35 // pred_check_branch
          %1274 = sbr.rel (%p1272) target = $region52
        $region51: #{tpu_custom_call.1} parent=35 // pred_region
          %s1276 = ssub.s32 256, 256
          %1277 = vsyncadd %s1268, %s1276
          %s1278 = smul.addr %s22, 2
          %s1279 = smul.addr %s1278, 128
          %s1280 = scalar_lea.hbm %s4, %s1279
          %s1281 = sshll.u32 %s1271, 4
          %s1282 = int_to_ptr.vmem [resolvable:$true] %s1281
          %1287 = dma.vmem_to_hbm [thread:$0]  %s1282, 256, %s1280, %s1268, 128, 128, 8
        $region52: #{tpu_custom_call.1} parent=35 // pred_fallthru
          _
      $region36: #{tpu_custom_call.1} parent=5 // pred_fallthru
        _
      %p1288 = scmp.le.s32.totalorder 2, %s17
      // Predicated region
      $region53: #{tpu_custom_call.1} parent=5 // pred_check
        %p1289 = pneg %p1288
      $region54: #{tpu_custom_call.1} parent=5 // pred_check_branch
        %1291 = sbr.rel (%p1289) target = $region56
      $region55: #{tpu_custom_call.1} parent=5 // pred_region
        %s1292 = ssub.s32 %s17, 2
        // Predicated region
        $region57: #{tpu_custom_call.1} parent=55 // pred_check
          %p1293 = pneg %p135
        $region58: #{tpu_custom_call.1} parent=55 // pred_check_branch
          %1295 = sbr.rel (%p1293) target = $region60
        $region59: #{tpu_custom_call.1} parent=55 // pred_region
          %s1296 = sand.u32 %s120, 1
          %s1297 = scalar_lea.sflag [#allocation4], %s1296
          %s1298 = sand.u32 %s120, 1
          %s1299 = smul.addr %s1298, 16
          %s1300 = scalar_lea.vmem [#allocation8], %s1299
          %1301 = dma.done %s1297, 256
        $region60: #{tpu_custom_call.1} parent=55 // pred_fallthru
          _
      $region56: #{tpu_custom_call.1} parent=5 // pred_fallthru
        _
    $region6: #{tpu_custom_call.1} parent=1 // loop_footer
      %s21 = sadd.s32 1, %s17
    $region7: #{tpu_custom_call.1} parent=1 // loop_footer_branch
      %16 = sbr.rel target = $region3
    $region8: #{tpu_custom_call.1} parent=1 // loop_exit
      _
    %1302 = vsyncpa [#allocation3], 1
    %s1303 = scalar_lea.sflag [#allocation3], 1
    %1304 = vsyncpa %s1303, 1
    %1305 = vsyncpa [#allocation6], 1
    %1306 = vsyncpa [#allocation4], 1
    %s1307 = scalar_lea.sflag [#allocation4], 1
    %1308 = vsyncpa %s1307, 1

</llo_original>
